<compile_context>
chip_gen: v7x
topology: tpu7x:2x2x1
jax: 0.10.0
libtpu: 0.0.40
codegen_flags: <defaults>
</compile_context>

<pallas_src>
import jax
import jax.numpy as jnp
from jax.experimental import pallas as pl
from jax.experimental.pallas import tpu as pltpu


def _round_up(x, m):
    return ((x + m - 1) // m) * m


def elr_kernel(x_ref, y_ref, h_ref, bce_ref, reg_ref):
    x = x_ref[...].astype(jnp.float32)        # logits          (TB, C)
    y = y_ref[...].astype(jnp.float32)        # labels          (TB, C)
    h = h_ref[...].astype(jnp.float32)        # pred_hist row   (1,  C) broadcasts

    # One exp per element, shared by sigmoid and the stable-BCE softplus term.
    e = jnp.exp(-jnp.abs(x))                  # EUP exp
    softplus = jnp.log1p(e)                   # EUP log1p

    # sigmoid(x) without a second exp:
    #   x >= 0: 1/(1+e)      x < 0: e/(1+e)      (e = exp(-|x|))
    # Exact reciprocal: approx rcp error gets amplified by 1/(1 - h*p) inside
    # the log below.
    r = pl.reciprocal(1.0 + e, approx=False)
    y_pred = jnp.clip(jnp.where(x >= 0.0, r, e * r), 0.0001, 1.0 - 0.0001)

    # BCEWithLogitsLoss(reduction='none'): max(x,0) - x*y + log1p(exp(-|x|))
    bce = jnp.maximum(x, 0.0) - x * y + softplus

    # ELR regularizer: log(1 - pred_hist[index] * y_pred); hist row broadcasts.
    reg = jnp.log(1.0 - h * y_pred)           # EUP log

    bce_ref[...] = bce.astype(bce_ref.dtype)
    reg_ref[...] = reg.astype(reg_ref.dtype)


def elr_forward(output, y_labeled, pred_hist, index, out_dtype=jnp.float32):
    """Pallas ELR forward.

    output, y_labeled : [B, C]  (f32 or bf16 -- compute is f32 in-kernel)
    pred_hist         : [N, C]
    index             : scalar sample index (python int or traced int32;
                        no recompile per distinct index)
    Returns (bce_loss, reg), both [B, C] `out_dtype`.
    """
    B, C = output.shape
    N, Ch = pred_hist.shape
    assert Ch == C, "pred_hist must have the same class dim as output"

    # Hoist the single-row history gather into the wrapper: traced index,
    # only C*4 bytes, and it avoids a (1, C) block on an (N, C) array whose
    # second-to-last block dim would be neither 8-divisible nor the full dim.
    idx = jnp.asarray(index, dtype=jnp.int32)
    h_row = jax.lax.dynamic_slice_in_dim(pred_hist, idx, 1, axis=0)  # (1, C)

    # dtype-aware sublane alignment for the batch tile.
    itemsize = jnp.dtype(output.dtype).itemsize
    row_align = 8 if itemsize >= 4 else (16 if itemsize == 2 else 32)

    # Generation-aware VMEM budget (v5e/v6e: 128 MiB, v7x: 64 MiB physical).
    try:
        phys_vmem = pltpu.get_tpu_info().vmem_capacity_bytes
    except Exception:
        phys_vmem = 64 * 1024 * 1024          # conservative fallback (v7x size)
    vmem_budget = min(phys_vmem // 2, 64 * 1024 * 1024)

    # Per-step double-buffered footprint: (x, y, bce, reg) * TB * C * 4 B * 2.
    bytes_per_row = 4 * C * 4 * 2
    tb_cap = max(row_align, (vmem_budget // bytes_per_row) // row_align * row_align)
    # Target ~2 MiB per input stream block (measured ~86% of HBM roofline).
    tb_target = max(row_align, (2 * 1024 * 1024 // (4 * C)) // row_align * row_align)
    TB = min(_round_up(B, row_align), tb_cap, tb_target, 4096)

    # v7x megacore: keep >= 2 grid steps whenever the batch is big enough so
    # "parallel" can shard across both TensorCores.
    if pl.cdiv(B, TB) < 2 and B >= 2 * row_align:
        TB = _round_up(pl.cdiv(B, 2), row_align)

    n_blocks = pl.cdiv(B, TB)                 # partial last block handled by Pallas
    vmem_limit = int(vmem_budget)

    bce, reg = pl.pallas_call(
        elr_kernel,
        out_shape=(
            jax.ShapeDtypeStruct((B, C), out_dtype),
            jax.ShapeDtypeStruct((B, C), out_dtype),
        ),
        grid_spec=pl.GridSpec(
            grid=(n_blocks,),
            in_specs=[
                pl.BlockSpec((TB, C), lambda i: (i, 0)),   # logits
                pl.BlockSpec((TB, C), lambda i: (i, 0)),   # labels
                pl.BlockSpec((1, C), lambda i: (0, 0)),    # hist row (full array)
            ],
            out_specs=(
                pl.BlockSpec((TB, C), lambda i: (i, 0)),   # bce
                pl.BlockSpec((TB, C), lambda i: (i, 0)),   # reg
            ),
        ),
        compiler_params=pltpu.CompilerParams(
            dimension_semantics=("parallel",),
            vmem_limit_bytes=vmem_limit,
        ),
    )(output, y_labeled, h_row)
    return bce, reg


def elr_forward_reference(output, y_labeled, pred_hist, index):
    """Pure-JAX reference mirroring the PyTorch module."""
    x = output.astype(jnp.float32)
    y = y_labeled.astype(jnp.float32)
    y_pred = jnp.clip(jax.nn.sigmoid(x), 0.0001, 1.0 - 0.0001)
    bce = jnp.maximum(x, 0.0) - x * y + jnp.log1p(jnp.exp(-jnp.abs(x)))
    reg = jnp.log(1.0 - pred_hist[index][None, :] * y_pred)
    return bce, reg


if __name__ == "__main__":
    key = jax.random.PRNGKey(0)
    k1, k2, k3 = jax.random.split(key, 3)

    batch = 8
    num_classes = 15
    num_samples = 32
    index = 3  # scalar sample index, as in the PyTorch `index.item()` path

    # deterministic synthetic parameters / inputs
    output = jax.random.normal(k1, (batch, num_classes), dtype=jnp.float32)
    y_labeled = (jax.random.uniform(k2, (batch, num_classes)) > 0.5).astype(jnp.float32)
    # pred_hist kept in [0, 1) so that 1 - hist * sigmoid(x) stays positive
    pred_hist = jax.random.uniform(k3, (num_samples, num_classes), dtype=jnp.float32)
    # prior / tau / beta / lam only affect update_hist, not forward; not needed here.

    idx_arr = jnp.asarray(index, dtype=jnp.int32)
    bce, reg = elr_forward(output, y_labeled, pred_hist, idx_arr)
    jax.block_until_ready((bce, reg))

    bce_ref, reg_ref = elr_forward_reference(output, y_labeled, pred_hist, index)
    assert bce.shape == bce_ref.shape and reg.shape == reg_ref.shape
    assert jnp.allclose(bce, bce_ref, atol=1e-5, rtol=1e-5)
    assert jnp.allclose(reg, reg_ref, atol=1e-5, rtol=1e-5)

    print("KERNEL_OK")
</pallas_src>

<mosaic_0001>
module attributes {stable_mosaic.version = 11 : i64} {
  func.func @elr_kernel(%arg0: i32, %arg1: memref<8x15xf32, #tpu.memory_space<vmem>>, %arg2: memref<8x15xf32, #tpu.memory_space<vmem>>, %arg3: memref<1x15xf32, #tpu.memory_space<vmem>>, %arg4: memref<8x15xf32, #tpu.memory_space<vmem>>, %arg5: memref<8x15xf32, #tpu.memory_space<vmem>>) attributes {dimension_semantics = [#tpu.dimension_semantics<parallel>], iteration_bounds = array<i64: 1>, scalar_prefetch = 0 : i64, scratch_operands = 0 : i64, tpu.core_type = #tpu.core_type<tc>, window_params = [{transform_indices = @transform_0, window_bounds = array<i64: 8, 15>}, {transform_indices = @transform_1, window_bounds = array<i64: 8, 15>}, {pipeline_mode = #tpu.pipeline_mode<synchronous>, transform_indices = @transform_2, window_bounds = array<i64: 1, 15>}, {transform_indices = @transform_3, window_bounds = array<i64: 8, 15>}, {transform_indices = @transform_4, window_bounds = array<i64: 8, 15>}]} {
    %c0 = arith.constant 0 : index
    %c0_0 = arith.constant 0 : index
    %0 = vector.load %arg1[%c0, %c0_0] : memref<8x15xf32, #tpu.memory_space<vmem>>, vector<8x15xf32>
    %c0_1 = arith.constant 0 : index
    %c0_2 = arith.constant 0 : index
    %1 = vector.load %arg2[%c0_1, %c0_2] : memref<8x15xf32, #tpu.memory_space<vmem>>, vector<8x15xf32>
    %c0_3 = arith.constant 0 : index
    %c0_4 = arith.constant 0 : index
    %2 = vector.load %arg3[%c0_3, %c0_4] : memref<1x15xf32, #tpu.memory_space<vmem>>, vector<1x15xf32>
    %3 = math.absf %0 : vector<8x15xf32>
    %cst = arith.constant 0.000000e+00 : f32
    %4 = vector.broadcast %cst : f32 to vector<8x15xf32>
    %5 = arith.subf %4, %3 : vector<8x15xf32>
    %6 = math.exp %5 : vector<8x15xf32>
    %7 = math.log1p %6 : vector<8x15xf32>
    %cst_5 = arith.constant 1.000000e+00 : f32
    %8 = vector.broadcast %cst_5 : f32 to vector<8x15xf32>
    %9 = arith.addf %8, %6 : vector<8x15xf32>
    %10 = tpu.reciprocal %9 : vector<8x15xf32> -> vector<8x15xf32>
    %cst_6 = arith.constant 0.000000e+00 : f32
    %11 = vector.broadcast %cst_6 : f32 to vector<8x15xf32>
    %12 = arith.cmpf oge, %0, %11 : vector<8x15xf32>
    %13 = arith.mulf %6, %10 : vector<8x15xf32>
    %14 = arith.select %12, %10, %13 : vector<8x15xi1>, vector<8x15xf32>
    %cst_7 = arith.constant 9.99999974E-5 : f32
    %cst_8 = arith.constant 0.999899983 : f32
    %15 = vector.broadcast %cst_7 : f32 to vector<8x15xf32>
    %16 = arith.maximumf %15, %14 : vector<8x15xf32>
    %17 = vector.broadcast %cst_8 : f32 to vector<8x15xf32>
    %18 = arith.minimumf %17, %16 : vector<8x15xf32>
    %cst_9 = arith.constant 0.000000e+00 : f32
    %19 = vector.broadcast %cst_9 : f32 to vector<8x15xf32>
    %20 = arith.maximumf %0, %19 : vector<8x15xf32>
    %21 = arith.mulf %0, %1 : vector<8x15xf32>
    %22 = arith.subf %20, %21 : vector<8x15xf32>
    %23 = arith.addf %22, %7 : vector<8x15xf32>
    %24 = vector.broadcast %2 : vector<1x15xf32> to vector<8x15xf32>
    %25 = arith.mulf %24, %18 : vector<8x15xf32>
    %cst_10 = arith.constant 1.000000e+00 : f32
    %26 = vector.broadcast %cst_10 : f32 to vector<8x15xf32>
    %27 = arith.subf %26, %25 : vector<8x15xf32>
    %28 = math.log %27 : vector<8x15xf32>
    %c0_11 = arith.constant 0 : index
    %c0_12 = arith.constant 0 : index
    %29 = vector.load %arg4[%c0_11, %c0_12] : memref<8x15xf32, #tpu.memory_space<vmem>>, vector<8x15xf32>
    tpu.vector_store %arg4[%c0_11, %c0_12], %23 {strides = array<i32>} : memref<8x15xf32, #tpu.memory_space<vmem>>, vector<8x15xf32>,
    %c0_13 = arith.constant 0 : index
    %c0_14 = arith.constant 0 : index
    %30 = vector.load %arg5[%c0_13, %c0_14] : memref<8x15xf32, #tpu.memory_space<vmem>>, vector<8x15xf32>
    tpu.vector_store %arg5[%c0_13, %c0_14], %28 {strides = array<i32>} : memref<8x15xf32, #tpu.memory_space<vmem>>, vector<8x15xf32>,
    return
  }
  func.func @transform_0(%arg0: i32) -> (i32, i32) {
    %c0_i32 = arith.constant 0 : i32
    %c0_i32_0 = arith.constant 0 : i32
    return %arg0, %c0_i32 : i32, i32
  }
  func.func @transform_1(%arg0: i32) -> (i32, i32) {
    %c0_i32 = arith.constant 0 : i32
    %c0_i32_0 = arith.constant 0 : i32
    return %arg0, %c0_i32 : i32, i32
  }
  func.func @transform_2(%arg0: i32) -> (i32, i32) {
    %c0_i32 = arith.constant 0 : i32
    %c0_i32_0 = arith.constant 0 : i32
    %c0_i32_1 = arith.constant 0 : i32
    return %c0_i32, %c0_i32_0 : i32, i32
  }
  func.func @transform_3(%arg0: i32) -> (i32, i32) {
    %c0_i32 = arith.constant 0 : i32
    %c0_i32_0 = arith.constant 0 : i32
    return %arg0, %c0_i32 : i32, i32
  }
  func.func @transform_4(%arg0: i32) -> (i32, i32) {
    %c0_i32 = arith.constant 0 : i32
    %c0_i32_0 = arith.constant 0 : i32
    return %arg0, %c0_i32 : i32, i32
  }
}

</mosaic_0001>

<llo_original>
// kernel: tpu_custom_call.1
$region0: #{tpu_custom_call.1}
  #allocation0 [shape = 'u32[]', space=smem, size = 0x4, offset = 0x4, fixed_abs, tag = 'smem constant byte address 0x4 - core index']
  #allocation1 [shape = 'u32[144,128]{1,0:T(1,128)}', space=vmem, size = 0x12000, scoped, tag = 'internal scratch']
  %s0 = inlined_call_operand.hbm [shape: f32[8,15], index: 0, kind: input, shape index: {}]
  %s1 = inlined_call_operand.hbm [shape: f32[8,15], index: 1, kind: input, shape index: {}]
  %s2 = inlined_call_operand.vmem [shape: f32[1,15], index: 2, kind: input, shape index: {}]
  %s3 = inlined_call_operand.hbm [shape: f32[8,15], index: 3, kind: output, shape index: {0}]
  %s4 = inlined_call_operand.hbm [shape: f32[8,15], index: 4, kind: output, shape index: {1}]
  %5 = xla_tuple %s3, %s4
  %s6 = sld [smem:[#allocation0]]
  $region38: #{tpu_custom_call.1} parent=0
    _
  %s8 = ssub.s32 1, %s6
  %s9 = scalar_select 0, %s8, %s6
  $region1: #{tpu_custom_call.1} parent=0
    #allocation2 [shape = 'u8[4096]{0}', space=vmem, size = 0x1000, scoped, tag = 'input window, operand 0, single buffered']
    #allocation3 [shape = 's32[1]{0}', space=sflag, size = 0x4, scoped, tag = 'scoped memory for tpu_custom_call.1']
    #allocation4 [shape = 's32[1]{0}', space=sflag, size = 0x4, scoped, tag = 'scoped memory for tpu_custom_call.1']
    #allocation5 [shape = 'u8[4096]{0}', space=vmem, size = 0x1000, scoped, tag = 'input window, operand 1, single buffered']
    #allocation6 [shape = 's32[1]{0}', space=sflag, size = 0x4, scoped, tag = 'scoped memory for tpu_custom_call.1']
    #allocation7 [shape = 'u8[4096]{0}', space=vmem, size = 0x1000, scoped, tag = 'output window, operand 0, single buffered']
    #allocation8 [shape = 'u8[4096]{0}', space=vmem, size = 0x1000, scoped, tag = 'output window, operand 1, single buffered']
    #allocation9 [shape = 's32[1]{0}', space=sflag, size = 0x4, scoped, tag = 'scoped memory for tpu_custom_call.1']
    %10 = vsyncpa [#allocation3], 0
    %11 = vsyncpa [#allocation6], 0
    %12 = vsyncpa [#allocation4], 0
    %13 = vsyncpa [#allocation9], 0
    // Predicated region
    $region2: #{tpu_custom_call.1} parent=1 // pred_check
      _
    $region3: #{tpu_custom_call.1} parent=1 // pred_check_branch
      %15 = sbr.rel (0) target = $region5
    $region4: #{tpu_custom_call.1} parent=1 // pred_region
      %s17 = ssub.s32 128, 128
      %18 = vsyncadd [#allocation3], %s17
      %s20 = sshll.u32 [#allocation2], 4
      %s21 = int_to_ptr.vmem [resolvable:$true] %s20
      %23 = dma.hbm_to_vmem [thread:$0]  %s0, 128, %s21, [#allocation3]
    $region5: #{tpu_custom_call.1} parent=1 // pred_fallthru
      _
    // Predicated region
    $region6: #{tpu_custom_call.1} parent=1 // pred_check
      _
    $region7: #{tpu_custom_call.1} parent=1 // pred_check_branch
      %25 = sbr.rel (0) target = $region9
    $region8: #{tpu_custom_call.1} parent=1 // pred_region
      %s27 = ssub.s32 128, 128
      %28 = vsyncadd [#allocation6], %s27
      %s30 = sshll.u32 [#allocation5], 4
      %s31 = int_to_ptr.vmem [resolvable:$true] %s30
      %33 = dma.hbm_to_vmem [thread:$0]  %s1, 128, %s31, [#allocation6]
    $region9: #{tpu_custom_call.1} parent=1 // pred_fallthru
      _
    // Predicated region
    $region10: #{tpu_custom_call.1} parent=1 // pred_check
      _
    $region11: #{tpu_custom_call.1} parent=1 // pred_check_branch
      %35 = sbr.rel (0) target = $region13
    $region12: #{tpu_custom_call.1} parent=1 // pred_region
      _
    $region13: #{tpu_custom_call.1} parent=1 // pred_fallthru
      _
    // Predicated region
    $region14: #{tpu_custom_call.1} parent=1 // pred_check
      _
    $region15: #{tpu_custom_call.1} parent=1 // pred_check_branch
      %37 = sbr.rel (0) target = $region17
    $region16: #{tpu_custom_call.1} parent=1 // pred_region
      %38 = dma.done [#allocation3], 128
    $region17: #{tpu_custom_call.1} parent=1 // pred_fallthru
      _
    // Predicated region
    $region18: #{tpu_custom_call.1} parent=1 // pred_check
      _
    $region19: #{tpu_custom_call.1} parent=1 // pred_check_branch
      %40 = sbr.rel (0) target = $region21
    $region20: #{tpu_custom_call.1} parent=1 // pred_region
      %41 = dma.done [#allocation6], 128
    $region21: #{tpu_custom_call.1} parent=1 // pred_fallthru
      _
    %v42 = vld [vmem:[#allocation2] sm:$0xff]
    %v43 = vld [vmem:[#allocation5] sm:$0xff]
    %v44 = vld [vmem:[%s2] sm:$0x1]
    %v45 = vand.u32 2147483647, %v42
    %v46 = vsub.f32 0.0, %v45
    %v47 = vmul.f32 %v46, 1.442695
    %v48 = vpow.pop %v47
    %v49 = vadd.f32 %v48, 1.0
    %v50 = vlog2.pop %v49
    %v51 = vmul.f32 %v50, 0.6931472
    %v52 = vmul.f32 -0.5, %v48
    %v53 = vadd.f32 %v52, 1.0
    %v54 = vmul.f32 %v53, %v48
    %v55 = vand.u32 2147483647, %v48
    %vm56 = vcmp.lt.f32.partialorder %v55, 0.0004427343
    %v57 = vsel %vm56, %v54, %v51
    %v58 = vadd.f32 %v48, 1.0
    %v59 = vrcp.pop %v58
    %vm60 = vcmp.ge.f32.partialorder %v42, 0.0
    %v61 = vmul.f32 %v48, %v59
    %v62 = vsel %vm60, %v59, %v61
    %v63 = vmax.f32 %v62, 0.0001
    %v64 = vmin.f32 %v63, 0.9999
    %v65 = vmax.f32 %v42, 0.0
    %v66 = vmul.f32 %v42, %v43
    %v67 = vsub.f32 %v65, %v66
    %v68 = vadd.f32 %v67, %v57
    %v70 = vlaneseq
    %v71 = vshrl.u32 %v70, 7
    %v72 = vsub.s32 0, %v71
    %v73 = vrot.slane %v44, %v72
    %v75 = vmul.f32 %v73, %v64
    %v76 = vsub.f32 1.0, %v75
    %v77 = vlog2.pop %v76
    %v78 = vmul.f32 %v77, 0.6931472
    %vm79 = vcmask 121856
    %80 = vst.msk [vmem:[#allocation7] sm:$0xff] %vm79, %v68
    %81 = vst.msk [vmem:[#allocation8] sm:$0xff] %vm79, %v78
    // Predicated region
    $region22: #{tpu_custom_call.1} parent=1 // pred_check
      _
    $region23: #{tpu_custom_call.1} parent=1 // pred_check_branch
      %83 = sbr.rel (0) target = $region25
    $region24: #{tpu_custom_call.1} parent=1 // pred_region
      %s85 = ssub.s32 128, 128
      %86 = vsyncadd [#allocation4], %s85
      %s88 = sshll.u32 [#allocation7], 4
      %s89 = int_to_ptr.vmem [resolvable:$true] %s88
      %91 = dma.vmem_to_hbm [thread:$0]  %s89, 128, %s3, [#allocation4]
    $region25: #{tpu_custom_call.1} parent=1 // pred_fallthru
      _
    // Predicated region
    $region26: #{tpu_custom_call.1} parent=1 // pred_check
      _
    $region27: #{tpu_custom_call.1} parent=1 // pred_check_branch
      %93 = sbr.rel (0) target = $region29
    $region28: #{tpu_custom_call.1} parent=1 // pred_region
      %s95 = ssub.s32 128, 128
      %96 = vsyncadd [#allocation9], %s95
      %s98 = sshll.u32 [#allocation8], 4
      %s99 = int_to_ptr.vmem [resolvable:$true] %s98
      %101 = dma.vmem_to_hbm [thread:$0]  %s99, 128, %s4, [#allocation9]
    $region29: #{tpu_custom_call.1} parent=1 // pred_fallthru
      _
    // Predicated region
    $region30: #{tpu_custom_call.1} parent=1 // pred_check
      _
    $region31: #{tpu_custom_call.1} parent=1 // pred_check_branch
      %103 = sbr.rel (0) target = $region33
    $region32: #{tpu_custom_call.1} parent=1 // pred_region
      %104 = dma.done [#allocation4], 128
    $region33: #{tpu_custom_call.1} parent=1 // pred_fallthru
      _
    // Predicated region
    $region34: #{tpu_custom_call.1} parent=1 // pred_check
      _
    $region35: #{tpu_custom_call.1} parent=1 // pred_check_branch
      %106 = sbr.rel (0) target = $region37
    $region36: #{tpu_custom_call.1} parent=1 // pred_region
      %107 = dma.done [#allocation9], 128
    $region37: #{tpu_custom_call.1} parent=1 // pred_fallthru
      _
    %108 = vsyncpa [#allocation3], 1
    %109 = vsyncpa [#allocation6], 1
    %110 = vsyncpa [#allocation4], 1
    %111 = vsyncpa [#allocation9], 1

</llo_original>
